<compile_context>
chip_gen: v7x
topology: tpu7x:2x2x1
jax: 0.10.0
libtpu: 0.0.40
codegen_flags: <defaults>
</compile_context>

<pallas_src>
import functools

import jax
import jax.numpy as jnp
from jax.experimental import pallas as pl
from jax.experimental.pallas import tpu as pltpu


def _round_up(x, m):
    return (x + m - 1) // m * m


def _sublane_multiple(dtype):
    # bf16 packs 2 rows per sublane, int8/fp8 pack 4 -> row-tile multiple.
    return {1: 32, 2: 16, 4: 8}.get(jnp.dtype(dtype).itemsize, 8)


def _fused_pool_cls_kernel(feat_ref,                    # VMEM (TILE_N, D), streamed
                           starts_ref, ends_ref,        # VMEM (B_pad, 1) int32, resident
                           invcnt_ref,                  # VMEM (B_pad, 1) f32, resident
                           w1_ref, b1_ref,              # (D, 256), (1, 256)
                           w2_ref, b2_ref,              # (256, 128), (1, 128)
                           w3_ref, b3_ref,              # (128, C), (1, C)
                           out_ref,                     # (B, C) logits
                           acc_ref):                    # VMEM scratch (B_pad, D) f32
    t = pl.program_id(0)
    n_tiles = pl.num_programs(0)
    tile_rows = feat_ref.shape[0]
    b_pad = acc_ref.shape[0]

    @pl.when(t == 0)
    def _init():
        acc_ref[...] = jnp.zeros_like(acc_ref)

    # One-hot routing matrix for this row tile: (B_pad, TILE_N).
    # Segment bounds were precomputed in the wrapper (loop-invariant).
    row_idx = t * tile_rows + jax.lax.broadcasted_iota(
        jnp.int32, (b_pad, tile_rows), 1)
    onehot = ((row_idx >= starts_ref[...]) &
              (row_idx < ends_ref[...])).astype(feat_ref.dtype)

    # Scatter-add this tile's rows into their segment sums with one MXU pass:
    # (B_pad, TILE_N) @ (TILE_N, D) -> (B_pad, D), accumulated in f32.
    acc_ref[...] += jnp.dot(onehot, feat_ref[...],
                            preferred_element_type=jnp.float32)

    @pl.when(t == n_tiles - 1)
    def _finalize():
        # Empty segments: inv_count clamped in the wrapper -> mean = 0.
        # TODO(synk): verify against torch_scatter.segment_csr if empty
        # segments can occur in practice.
        pooled = acc_ref[...] * invcnt_ref[...]               # (B_pad, D) f32

        # No f32 weight copies: cast the tiny activations to the weight dtype
        # and let the MXU accumulate in f32.
        cdt = w1_ref.dtype
        h1 = jnp.dot(pooled.astype(cdt), w1_ref[...],
                     preferred_element_type=jnp.float32)
        h1 = jnp.maximum(h1 + b1_ref[...], 0.0)
        h2 = jnp.dot(h1.astype(cdt), w2_ref[...],
                     preferred_element_type=jnp.float32)
        h2 = jnp.maximum(h2 + b2_ref[...], 0.0)
        logits = jnp.dot(h2.astype(cdt), w3_ref[...],
                         preferred_element_type=jnp.float32) + b3_ref[...]
        out_ref[...] = logits[:out_ref.shape[0], :].astype(out_ref.dtype)


@functools.partial(jax.jit,
                   static_argnames=("num_segments", "num_classes", "tile_n"))
def default_classifier_forward(feat, indptr, params, *,
                               num_segments, num_classes, tile_n=4096):
    """pooled = segment_csr(feat, indptr, 'mean'); logits = cls_head(pooled)."""
    n, d = feat.shape

    # Dtype-aware row tiling (16 for bf16, 32 for int8/fp8, 8 for f32).
    sub = _sublane_multiple(feat.dtype)
    tile_n = max(sub, min(int(tile_n), _round_up(n, sub)))
    tile_n = _round_up(tile_n, sub)
    n_pad = _round_up(n, tile_n)
    if n_pad != n:
        # Rows >= indptr[-1] are routed to no segment, so zero padding is inert.
        feat = jnp.pad(feat, ((0, n_pad - n), (0, 0)))
    num_tiles = n_pad // tile_n
    b_pad = _round_up(num_segments, 8)

    # Segment bounds / inverse counts precomputed ONCE (hoisted out of kernel).
    starts = jnp.pad(indptr[:-1].astype(jnp.int32), (0, b_pad - num_segments))
    ends = jnp.pad(indptr[1:].astype(jnp.int32), (0, b_pad - num_segments))
    counts = jnp.maximum((ends - starts).astype(jnp.float32), 1.0)
    inv_counts = (1.0 / counts).reshape(b_pad, 1)
    starts = starts.reshape(b_pad, 1)
    ends = ends.reshape(b_pad, 1)

    w1, b1 = params["w1"], params["b1"]
    w2, b2 = params["w2"], params["b2"]
    w3, b3 = params["w3"], params["b3"]

    # Explicit VMEM budget: 2x streamed feat tile + resident constants +
    # accumulator + output, with headroom.  Capped at 48 MiB so it stays valid
    # on v7x (64 MiB physical per core) as well as v5e/v6e.
    itemsize = jnp.dtype(feat.dtype).itemsize
    stream_bytes = 2 * tile_n * d * itemsize
    const_bytes = sum(int(a.size) * jnp.dtype(a.dtype).itemsize
                      for a in (w1, b1, w2, b2, w3, b3))
    const_bytes += 3 * b_pad * 128 * 4                      # starts/ends/inv (padded lanes)
    acc_bytes = b_pad * d * 4
    out_bytes = 2 * b_pad * _round_up(num_classes, 128) * 4
    need = stream_bytes + const_bytes + acc_bytes + out_bytes
    vmem_limit = int(min(max(2 * need + (2 << 20), 16 << 20), 48 << 20))

    resident = pl.BlockSpec(memory_space=pltpu.MemorySpace.VMEM)  # single-buffered

    return pl.pallas_call(
        _fused_pool_cls_kernel,
        out_shape=jax.ShapeDtypeStruct((num_segments, num_classes), jnp.float32),
        grid_spec=pltpu.PrefetchScalarGridSpec(
            num_scalar_prefetch=0,
            grid=(num_tiles,),
            in_specs=[
                pl.BlockSpec((tile_n, d), lambda t: (t, 0)),   # feat stream
                resident, resident, resident,                  # starts, ends, 1/count
                resident, resident,                            # w1, b1
                resident, resident,                            # w2, b2
                resident, resident,                            # w3, b3
            ],
            out_specs=pl.BlockSpec((num_segments, num_classes), lambda t: (0, 0)),
            scratch_shapes=[pltpu.VMEM((b_pad, d), jnp.float32)],
        ),
        compiler_params=pltpu.CompilerParams(
            # Single reduction axis (accumulator carried across row tiles).
            # TODO(synk): v7x dual-TC split needs per-core partial accumulators
            # plus a combine step; kept single-core here.
            dimension_semantics=("arbitrary",),
            vmem_limit_bytes=vmem_limit),
    )(feat, starts, ends, inv_counts, w1, b1, w2, b2, w3, b3)


# ----------------------------------------------------------------------------
# Parameter construction (matches nn.Module __init__ shapes; eval-mode
# BatchNorm1d folded into the preceding Linear: gamma=1, beta=0, mean=0, var=1).
# Weights are cast to `param_dtype` so they can be streamed as bf16; biases f32.
# ----------------------------------------------------------------------------
def make_params(key, embed_dim=256, num_classes=40, param_dtype=jnp.float32):
    ks = jax.random.split(key, 6)
    dims = [(embed_dim, 256), (256, 128), (128, num_classes)]
    w, b = {}, {}
    for i, (din, dout) in enumerate(dims):
        w[i + 1] = jax.random.normal(ks[2 * i], (din, dout), jnp.float32) * 0.02
        b[i + 1] = jax.random.normal(ks[2 * i + 1], (dout,), jnp.float32) * 0.01
    eps = 1e-5
    for i, dout in [(1, 256), (2, 128)]:
        gamma = jnp.ones((dout,), jnp.float32)
        beta = jnp.zeros((dout,), jnp.float32)
        mean = jnp.zeros((dout,), jnp.float32)
        var = jnp.ones((dout,), jnp.float32)
        scale = gamma / jnp.sqrt(var + eps)
        w[i] = w[i] * scale[None, :]
        b[i] = (b[i] - mean) * scale + beta
    params = {}
    for i in (1, 2, 3):
        params[f"w{i}"] = w[i].astype(param_dtype)
        params[f"b{i}"] = b[i][None, :].astype(jnp.float32)   # (1, D) rows
    return params


def reference_forward(feat, indptr, params):
    """Plain-JAX reference (f32 math, highest matmul precision)."""
    f32 = jnp.float32
    hp = jax.lax.Precision.HIGHEST
    feat = feat.astype(f32)
    segs = []
    for b in range(indptr.shape[0] - 1):
        s, e = int(indptr[b]), int(indptr[b + 1])
        segs.append(feat[s:e].mean(axis=0))
    x = jnp.stack(segs, axis=0)
    w1, b1 = params["w1"].astype(f32), params["b1"].astype(f32)
    w2, b2 = params["w2"].astype(f32), params["b2"].astype(f32)
    w3, b3 = params["w3"].astype(f32), params["b3"].astype(f32)
    h = jnp.maximum(jnp.dot(x, w1, precision=hp) + b1, 0.0)
    h = jnp.maximum(jnp.dot(h, w2, precision=hp) + b2, 0.0)
    return jnp.dot(h, w3, precision=hp) + b3


if __name__ == "__main__":
    key = jax.random.PRNGKey(0)
    k_feat, k_par = jax.random.split(key)

    embed_dim = 256
    num_classes = 40
    n_points = 300            # total points across the batch ("backbone output")
    batch = 2
    stream_dtype = jnp.bfloat16   # feat/weights streamed as bf16; f32 accumulation

    feat = jax.random.normal(k_feat, (n_points, embed_dim), jnp.float32)
    feat = feat.astype(stream_dtype)
    # offset = [100, 300]  ->  indptr = pad(offset, (1, 0)) = [0, 100, 300]
    indptr = jnp.array([0, 100, 300], dtype=jnp.int32)

    params = make_params(k_par, embed_dim=embed_dim, num_classes=num_classes,
                         param_dtype=stream_dtype)

    # Small tile at demo size to exercise multi-tile accumulation + padding;
    # real workloads should use the default tile_n (4096-8192 rows).
    logits = default_classifier_forward(
        feat, indptr, params,
        num_segments=batch, num_classes=num_classes, tile_n=128)
    jax.block_until_ready(logits)

    ref = reference_forward(feat, indptr, params)
    assert logits.shape == (batch, num_classes)
    max_err = jnp.max(jnp.abs(logits - ref))
    assert jnp.allclose(logits, ref, atol=2e-3, rtol=1e-2), (
        f"mismatch vs reference: max |diff| = {max_err}")

    print("KERNEL_OK")
</pallas_src>

<mosaic_0001>
module attributes {stable_mosaic.version = 11 : i64} {
  func.func @_fused_pool_cls_kernel(%arg0: i32, %arg1: memref<128x256xbf16, #tpu.memory_space<vmem>>, %arg2: memref<8x1xi32, #tpu.memory_space<vmem>>, %arg3: memref<8x1xi32, #tpu.memory_space<vmem>>, %arg4: memref<8x1xf32, #tpu.memory_space<vmem>>, %arg5: memref<256x256xbf16, #tpu.memory_space<vmem>>, %arg6: memref<1x256xf32, #tpu.memory_space<vmem>>, %arg7: memref<256x128xbf16, #tpu.memory_space<vmem>>, %arg8: memref<1x128xf32, #tpu.memory_space<vmem>>, %arg9: memref<128x40xbf16, #tpu.memory_space<vmem>>, %arg10: memref<1x40xf32, #tpu.memory_space<vmem>>, %arg11: memref<2x40xf32, #tpu.memory_space<vmem>>, %arg12: memref<8x256xf32, #tpu.memory_space<vmem>>) attributes {dimension_semantics = [#tpu.dimension_semantics<arbitrary>], iteration_bounds = array<i64: 3>, scalar_prefetch = 0 : i64, scratch_operands = 1 : i64, tpu.core_type = #tpu.core_type<tc>, window_params = [{transform_indices = @transform_0, window_bounds = array<i64: 128, 256>}, {pipeline_mode = #tpu.pipeline_mode<synchronous>, transform_indices = @transform_1, window_bounds = array<i64: 8, 1>}, {pipeline_mode = #tpu.pipeline_mode<synchronous>, transform_indices = @transform_2, window_bounds = array<i64: 8, 1>}, {pipeline_mode = #tpu.pipeline_mode<synchronous>, transform_indices = @transform_3, window_bounds = array<i64: 8, 1>}, {pipeline_mode = #tpu.pipeline_mode<synchronous>, transform_indices = @transform_4, window_bounds = array<i64: 256, 256>}, {pipeline_mode = #tpu.pipeline_mode<synchronous>, transform_indices = @transform_5, window_bounds = array<i64: 1, 256>}, {pipeline_mode = #tpu.pipeline_mode<synchronous>, transform_indices = @transform_6, window_bounds = array<i64: 256, 128>}, {pipeline_mode = #tpu.pipeline_mode<synchronous>, transform_indices = @transform_7, window_bounds = array<i64: 1, 128>}, {pipeline_mode = #tpu.pipeline_mode<synchronous>, transform_indices = @transform_8, window_bounds = array<i64: 128, 40>}, {pipeline_mode = #tpu.pipeline_mode<synchronous>, transform_indices = @transform_9, window_bounds = array<i64: 1, 40>}, {pipeline_mode = #tpu.pipeline_mode<synchronous>, transform_indices = @transform_10, window_bounds = array<i64: 2, 40>}]} {
    %c0_i32 = arith.constant 0 : i32
    %0 = arith.cmpi eq, %arg0, %c0_i32 : i32
    %1 = arith.extui %0 : i1 to i32
    %c0_i32_0 = arith.constant 0 : i32
    %2 = arith.cmpi ne, %1, %c0_i32_0 : i32
    scf.if %2 {
      %cst_11 = arith.constant 0.000000e+00 : f32
      %25 = vector.broadcast %cst_11 : f32 to vector<8x256xf32>
      %c0_12 = arith.constant 0 : index
      %c0_13 = arith.constant 0 : index
      %26 = vector.load %arg12[%c0_12, %c0_13] : memref<8x256xf32, #tpu.memory_space<vmem>>, vector<8x256xf32>
      tpu.vector_store %arg12[%c0_12, %c0_13], %25 {strides = array<i32>} : memref<8x256xf32, #tpu.memory_space<vmem>>, vector<8x256xf32>,
    } else {
    }
    %c128_i32 = arith.constant 128 : i32
    %3 = arith.muli %arg0, %c128_i32 : i32
    %4 = tpu.iota {dimensions = array<i32: 1>} : vector<8x128xi32>
    %5 = vector.broadcast %3 : i32 to vector<8x128xi32>
    %6 = arith.addi %5, %4 : vector<8x128xi32>
    %c0 = arith.constant 0 : index
    %c0_1 = arith.constant 0 : index
    %7 = vector.load %arg2[%c0, %c0_1] : memref<8x1xi32, #tpu.memory_space<vmem>>, vector<8x1xi32>
    %8 = vector.broadcast %7 : vector<8x1xi32> to vector<8x128xi32>
    %9 = arith.cmpi sge, %6, %8 : vector<8x128xi32>
    %c0_2 = arith.constant 0 : index
    %c0_3 = arith.constant 0 : index
    %10 = vector.load %arg3[%c0_2, %c0_3] : memref<8x1xi32, #tpu.memory_space<vmem>>, vector<8x1xi32>
    %11 = vector.broadcast %10 : vector<8x1xi32> to vector<8x128xi32>
    %12 = arith.cmpi slt, %6, %11 : vector<8x128xi32>
    %13 = arith.andi %9, %12 : vector<8x128xi1>
    %14 = arith.extui %13 : vector<8x128xi1> to vector<8x128xi32>
    %15 = arith.sitofp %14 : vector<8x128xi32> to vector<8x128xf32>
    %16 = arith.truncf %15 : vector<8x128xf32> to vector<8x128xbf16>
    %c0_4 = arith.constant 0 : index
    %c0_5 = arith.constant 0 : index
    %17 = vector.load %arg12[%c0_4, %c0_5] : memref<8x256xf32, #tpu.memory_space<vmem>>, vector<8x256xf32>
    %c0_6 = arith.constant 0 : index
    %c0_7 = arith.constant 0 : index
    %18 = vector.load %arg1[%c0_6, %c0_7] : memref<128x256xbf16, #tpu.memory_space<vmem>>, vector<128x256xbf16>
    %cst = arith.constant dense<0.000000e+00> : vector<8x256xf32>
    %19 = tpu.matmul %16, %18, %cst {dimension_numbers = #tpu.dot_dimension_numbers<[1], [0], [0], [1], [0, 0, 1, 1], [], []>} : vector<8x128xbf16>, vector<128x256xbf16>, vector<8x256xf32> -> vector<8x256xf32>
    %20 = arith.addf %17, %19 : vector<8x256xf32>
    %c0_8 = arith.constant 0 : index
    %c0_9 = arith.constant 0 : index
    %21 = vector.load %arg12[%c0_8, %c0_9] : memref<8x256xf32, #tpu.memory_space<vmem>>, vector<8x256xf32>
    tpu.vector_store %arg12[%c0_8, %c0_9], %20 {strides = array<i32>} : memref<8x256xf32, #tpu.memory_space<vmem>>, vector<8x256xf32>,
    %c2_i32 = arith.constant 2 : i32
    %22 = arith.cmpi eq, %arg0, %c2_i32 : i32
    %23 = arith.extui %22 : i1 to i32
    %c0_i32_10 = arith.constant 0 : i32
    %24 = arith.cmpi ne, %23, %c0_i32_10 : i32
    scf.if %24 {
      %c0_11 = arith.constant 0 : index
      %c0_12 = arith.constant 0 : index
      %25 = vector.load %arg12[%c0_11, %c0_12] : memref<8x256xf32, #tpu.memory_space<vmem>>, vector<8x256xf32>
      %c0_13 = arith.constant 0 : index
      %c0_14 = arith.constant 0 : index
      %26 = vector.load %arg4[%c0_13, %c0_14] : memref<8x1xf32, #tpu.memory_space<vmem>>, vector<8x1xf32>
      %27 = vector.broadcast %26 : vector<8x1xf32> to vector<8x256xf32>
      %28 = arith.mulf %25, %27 : vector<8x256xf32>
      %29 = arith.truncf %28 : vector<8x256xf32> to vector<8x256xbf16>
      %c0_15 = arith.constant 0 : index
      %c0_16 = arith.constant 0 : index
      %30 = vector.load %arg5[%c0_15, %c0_16] : memref<256x256xbf16, #tpu.memory_space<vmem>>, vector<256x256xbf16>
      %cst_17 = arith.constant dense<0.000000e+00> : vector<8x256xf32>
      %31 = tpu.matmul %29, %30, %cst_17 {dimension_numbers = #tpu.dot_dimension_numbers<[1], [0], [0], [1], [0, 0, 1, 1], [], []>} : vector<8x256xbf16>, vector<256x256xbf16>, vector<8x256xf32> -> vector<8x256xf32>
      %c0_18 = arith.constant 0 : index
      %c0_19 = arith.constant 0 : index
      %32 = vector.load %arg6[%c0_18, %c0_19] : memref<1x256xf32, #tpu.memory_space<vmem>>, vector<1x256xf32>
      %33 = vector.broadcast %32 : vector<1x256xf32> to vector<8x256xf32>
      %34 = arith.addf %31, %33 : vector<8x256xf32>
      %cst_20 = arith.constant 0.000000e+00 : f32
      %35 = vector.broadcast %cst_20 : f32 to vector<8x256xf32>
      %36 = arith.maximumf %34, %35 : vector<8x256xf32>
      %37 = arith.truncf %36 : vector<8x256xf32> to vector<8x256xbf16>
      %c0_21 = arith.constant 0 : index
      %c0_22 = arith.constant 0 : index
      %38 = vector.load %arg7[%c0_21, %c0_22] : memref<256x128xbf16, #tpu.memory_space<vmem>>, vector<256x128xbf16>
      %cst_23 = arith.constant dense<0.000000e+00> : vector<8x128xf32>
      %39 = tpu.matmul %37, %38, %cst_23 {dimension_numbers = #tpu.dot_dimension_numbers<[1], [0], [0], [1], [0, 0, 1, 1], [], []>} : vector<8x256xbf16>, vector<256x128xbf16>, vector<8x128xf32> -> vector<8x128xf32>
      %c0_24 = arith.constant 0 : index
      %c0_25 = arith.constant 0 : index
      %40 = vector.load %arg8[%c0_24, %c0_25] : memref<1x128xf32, #tpu.memory_space<vmem>>, vector<1x128xf32>
      %41 = vector.broadcast %40 : vector<1x128xf32> to vector<8x128xf32>
      %42 = arith.addf %39, %41 : vector<8x128xf32>
      %cst_26 = arith.constant 0.000000e+00 : f32
      %43 = vector.broadcast %cst_26 : f32 to vector<8x128xf32>
      %44 = arith.maximumf %42, %43 : vector<8x128xf32>
      %45 = arith.truncf %44 : vector<8x128xf32> to vector<8x128xbf16>
      %c0_27 = arith.constant 0 : index
      %c0_28 = arith.constant 0 : index
      %46 = vector.load %arg9[%c0_27, %c0_28] : memref<128x40xbf16, #tpu.memory_space<vmem>>, vector<128x40xbf16>
      %cst_29 = arith.constant dense<0.000000e+00> : vector<8x40xf32>
      %47 = tpu.matmul %45, %46, %cst_29 {dimension_numbers = #tpu.dot_dimension_numbers<[1], [0], [0], [1], [0, 0, 1, 1], [], []>} : vector<8x128xbf16>, vector<128x40xbf16>, vector<8x40xf32> -> vector<8x40xf32>
      %c0_30 = arith.constant 0 : index
      %c0_31 = arith.constant 0 : index
      %48 = vector.load %arg10[%c0_30, %c0_31] : memref<1x40xf32, #tpu.memory_space<vmem>>, vector<1x40xf32>
      %49 = vector.broadcast %48 : vector<1x40xf32> to vector<8x40xf32>
      %50 = arith.addf %47, %49 : vector<8x40xf32>
      %51 = vector.extract_strided_slice %50 {offsets = [0, 0], sizes = [2, 40], strides = [1, 1]} : vector<8x40xf32> to vector<2x40xf32>
      %c0_32 = arith.constant 0 : index
      %c0_33 = arith.constant 0 : index
      %52 = vector.load %arg11[%c0_32, %c0_33] : memref<2x40xf32, #tpu.memory_space<vmem>>, vector<2x40xf32>
      tpu.vector_store %arg11[%c0_32, %c0_33], %51 {strides = array<i32>} : memref<2x40xf32, #tpu.memory_space<vmem>>, vector<2x40xf32>,
    } else {
    }
    return
  }
  func.func @transform_0(%arg0: i32) -> (i32, i32) {
    %c0_i32 = arith.constant 0 : i32
    %c0_i32_0 = arith.constant 0 : i32
    return %arg0, %c0_i32 : i32, i32
  }
  func.func @transform_1(%arg0: i32) -> (i32, i32) {
    %c0_i32 = arith.constant 0 : i32
    %c0_i32_0 = arith.constant 0 : i32
    %c0_i32_1 = arith.constant 0 : i32
    return %c0_i32, %c0_i32_0 : i32, i32
  }
  func.func @transform_2(%arg0: i32) -> (i32, i32) {
    %c0_i32 = arith.constant 0 : i32
    %c0_i32_0 = arith.constant 0 : i32
    %c0_i32_1 = arith.constant 0 : i32
    return %c0_i32, %c0_i32_0 : i32, i32
  }
  func.func @transform_3(%arg0: i32) -> (i32, i32) {
    %c0_i32 = arith.constant 0 : i32
    %c0_i32_0 = arith.constant 0 : i32
    %c0_i32_1 = arith.constant 0 : i32
    return %c0_i32, %c0_i32_0 : i32, i32
  }
  func.func @transform_4(%arg0: i32) -> (i32, i32) {
    %c0_i32 = arith.constant 0 : i32
    %c0_i32_0 = arith.constant 0 : i32
    %c0_i32_1 = arith.constant 0 : i32
    return %c0_i32, %c0_i32_0 : i32, i32
  }
  func.func @transform_5(%arg0: i32) -> (i32, i32) {
    %c0_i32 = arith.constant 0 : i32
    %c0_i32_0 = arith.constant 0 : i32
    %c0_i32_1 = arith.constant 0 : i32
    return %c0_i32, %c0_i32_0 : i32, i32
  }
  func.func @transform_6(%arg0: i32) -> (i32, i32) {
    %c0_i32 = arith.constant 0 : i32
    %c0_i32_0 = arith.constant 0 : i32
    %c0_i32_1 = arith.constant 0 : i32
    return %c0_i32, %c0_i32_0 : i32, i32
  }
  func.func @transform_7(%arg0: i32) -> (i32, i32) {
    %c0_i32 = arith.constant 0 : i32
    %c0_i32_0 = arith.constant 0 : i32
    %c0_i32_1 = arith.constant 0 : i32
    return %c0_i32, %c0_i32_0 : i32, i32
  }
  func.func @transform_8(%arg0: i32) -> (i32, i32) {
    %c0_i32 = arith.constant 0 : i32
    %c0_i32_0 = arith.constant 0 : i32
    %c0_i32_1 = arith.constant 0 : i32
    return %c0_i32, %c0_i32_0 : i32, i32
  }
  func.func @transform_9(%arg0: i32) -> (i32, i32) {
    %c0_i32 = arith.constant 0 : i32
    %c0_i32_0 = arith.constant 0 : i32
    %c0_i32_1 = arith.constant 0 : i32
    return %c0_i32, %c0_i32_0 : i32, i32
  }
  func.func @transform_10(%arg0: i32) -> (i32, i32) {
    %c0_i32 = arith.constant 0 : i32
    %c0_i32_0 = arith.constant 0 : i32
    %c0_i32_1 = arith.constant 0 : i32
    return %c0_i32, %c0_i32_0 : i32, i32
  }
}

</mosaic_0001>

<llo_original>
// kernel: default_classifier_forward.1
$region0: #{default_classifier_forward.1}
  #allocation0 [shape = 'u32[]', space=smem, size = 0x4, offset = 0x4, fixed_abs, tag = 'smem constant byte address 0x4 - core index']
  #allocation1 [shape = 'u32[144,128]{1,0:T(1,128)}', space=vmem, size = 0x12000, scoped, tag = 'internal scratch']
  #allocation2 [shape = 'f32[8,256]{1,0:T(8,128)}', space=vmem, size = 0x2000, scoped, tag = 'scratch operand']
  %s0 = inlined_call_operand.vmem [shape: bf16[384,256], index: 0, kind: input, shape index: {}]
  %s1 = inlined_call_operand.vmem [shape: s32[8,1], index: 1, kind: input, shape index: {}]
  %s2 = inlined_call_operand.vmem [shape: s32[8,1], index: 2, kind: input, shape index: {}]
  %s3 = inlined_call_operand.vmem [shape: f32[8,1], index: 3, kind: input, shape index: {}]
  %s4 = inlined_call_operand.vmem [shape: bf16[256,256], index: 4, kind: input, shape index: {}]
  %s5 = inlined_call_operand.vmem [shape: f32[1,256], index: 5, kind: input, shape index: {}]
  %s6 = inlined_call_operand.vmem [shape: bf16[256,128], index: 6, kind: input, shape index: {}]
  %s7 = inlined_call_operand.vmem [shape: f32[1,128], index: 7, kind: input, shape index: {}]
  %s8 = inlined_call_operand.vmem [shape: bf16[128,40], index: 8, kind: input, shape index: {}]
  %s9 = inlined_call_operand.vmem [shape: f32[1,40], index: 9, kind: input, shape index: {}]
  %s10 = inlined_call_operand.hbm [shape: f32[2,40], index: 10, kind: output, shape index: {}]
  %s11 = sld [smem:[#allocation0]]
  $region81: #{default_classifier_forward.1} parent=0
    _
  %s13 = ssub.s32 1, %s11
  %s14 = scalar_select 0, %s13, %s11
  $region1: #{default_classifier_forward.1} parent=0
    #allocation3 [shape = 'u8[1024]{0}', space=vmem, size = 0x400, scoped, tag = 'output window, operand 0, single buffered']
    #allocation4 [shape = 's32[2]{0}', space=sflag, size = 0x8, scoped, tag = 'scoped memory for default_classifier_forward.1']
    %15 = vsyncpa [#allocation4], 0
    loop: start=0, step=1, limit=5
    $region2: #{default_classifier_forward.1} parent=1 // loop_pre_header
      _
    $region3: #{default_classifier_forward.1} parent=1 // loop_header
      %s17 = sphi 0, %s21
      %p18 = scmp.ge.s32.totalorder %s17, 5
      %s27 = sphi 0, %s29
      %s30 = sphi 0, %s27
      %s31 = sphi 0, %s30
      %s47 = sphi 0, %s31
      %s51 = sphi 0, %s51
      %s53 = sphi 0, %s51
      %s54 = sphi 0, %s53
      %s68 = sphi 0, %s54
      %s72 = sphi 0, %s72
      %s74 = sphi 0, %s72
      %s75 = sphi 0, %s74
      %s89 = sphi 0, %s75
      %s93 = sphi 0, %s93
      %s95 = sphi 0, %s93
      %s96 = sphi 0, %s95
      %s110 = sphi 0, %s96
      %s114 = sphi 0, %s114
      %s116 = sphi 0, %s114
      %s117 = sphi 0, %s116
      %s131 = sphi 0, %s117
      %s135 = sphi 0, %s135
      %s137 = sphi 0, %s135
      %s138 = sphi 0, %s137
      %s152 = sphi 0, %s138
      %s156 = sphi 0, %s156
      %s158 = sphi 0, %s156
      %s159 = sphi 0, %s158
      %s173 = sphi 0, %s159
      %s177 = sphi 0, %s177
      %s179 = sphi 0, %s177
      %s180 = sphi 0, %s179
      %s194 = sphi 0, %s180
      %s198 = sphi 0, %s198
      %s200 = sphi 0, %s198
      %s201 = sphi 0, %s200
      %s215 = sphi 0, %s201
      %s219 = sphi 0, %s219
      %s221 = sphi 0, %s219
      %s222 = sphi 0, %s221
      %s236 = sphi 0, %s222
      %s240 = sphi 0, %s240
      %s242 = sphi 0, %s240
      %s243 = sphi 0, %s242
      %s257 = sphi 0, %s243
    $region4: #{default_classifier_forward.1} parent=1 // loop_header_branch
      %20 = sbr.rel (%p18) target = $region8
    $region5: #{default_classifier_forward.1} parent=1 // loop_body
      %s22 = ssub.s32 %s17, 1
      %s23 = ssub.s32 %s17, 2
      %s24 = sadd.s32 %s17, 1
      %s25 = ssub.s32 %s17, %s24
      %p26 = scmp.eq.s32.totalorder %s25, 0
      %s28 = sadd.s32 %s27, 1
      %s29 = scalar_select %p26, %s27, %s28
      %p32 = pneg %p26
      %p33 = scmp.eq.s32.totalorder %s17, 2
      %p34 = por %p32, %p33
      %p35 = scmp.ne.s32.totalorder %s27, %s30
      %p36 = scmp.eq.s32.totalorder %s17, 0
      %p37 = por %p35, %p36
      %p38 = scmp.ne.s32.totalorder %s27, %s30
      %p39 = scmp.eq.s32.totalorder %s22, 2
      %p40 = por %p38, %p39
      %p41 = scmp.ne.s32.totalorder %s30, %s31
      %p42 = scmp.eq.s32.totalorder %s22, 0
      %p43 = por %p41, %p42
      %p44 = scmp.ne.s32.totalorder %s30, %s31
      %p45 = scmp.eq.s32.totalorder %s23, 2
      %p46 = por %p44, %p45
      %p48 = scmp.ne.s32.totalorder %s31, %s47
      %p49 = scmp.eq.s32.totalorder %s23, 0
      %p50 = por %p48, %p49
      %s52 = sadd.s32 %s51, 1
      %p55 = scmp.eq.s32.totalorder %s17, 2
      %p56 = scmp.ne.s32.totalorder %s51, %s53
      %p57 = scmp.eq.s32.totalorder %s17, 0
      %p58 = por %p56, %p57
      %p59 = scmp.ne.s32.totalorder %s51, %s53
      %p60 = scmp.eq.s32.totalorder %s22, 2
      %p61 = por %p59, %p60
      %p62 = scmp.ne.s32.totalorder %s53, %s54
      %p63 = scmp.eq.s32.totalorder %s22, 0
      %p64 = por %p62, %p63
      %p65 = scmp.ne.s32.totalorder %s53, %s54
      %p66 = scmp.eq.s32.totalorder %s23, 2
      %p67 = por %p65, %p66
      %p69 = scmp.ne.s32.totalorder %s54, %s68
      %p70 = scmp.eq.s32.totalorder %s23, 0
      %p71 = por %p69, %p70
      %s73 = sadd.s32 %s72, 1
      %p76 = scmp.eq.s32.totalorder %s17, 2
      %p77 = scmp.ne.s32.totalorder %s72, %s74
      %p78 = scmp.eq.s32.totalorder %s17, 0
      %p79 = por %p77, %p78
      %p80 = scmp.ne.s32.totalorder %s72, %s74
      %p81 = scmp.eq.s32.totalorder %s22, 2
      %p82 = por %p80, %p81
      %p83 = scmp.ne.s32.totalorder %s74, %s75
      %p84 = scmp.eq.s32.totalorder %s22, 0
      %p85 = por %p83, %p84
      %p86 = scmp.ne.s32.totalorder %s74, %s75
      %p87 = scmp.eq.s32.totalorder %s23, 2
      %p88 = por %p86, %p87
      %p90 = scmp.ne.s32.totalorder %s75, %s89
      %p91 = scmp.eq.s32.totalorder %s23, 0
      %p92 = por %p90, %p91
      %s94 = sadd.s32 %s93, 1
      %p97 = scmp.eq.s32.totalorder %s17, 2
      %p98 = scmp.ne.s32.totalorder %s93, %s95
      %p99 = scmp.eq.s32.totalorder %s17, 0
      %p100 = por %p98, %p99
      %p101 = scmp.ne.s32.totalorder %s93, %s95
      %p102 = scmp.eq.s32.totalorder %s22, 2
      %p103 = por %p101, %p102
      %p104 = scmp.ne.s32.totalorder %s95, %s96
      %p105 = scmp.eq.s32.totalorder %s22, 0
      %p106 = por %p104, %p105
      %p107 = scmp.ne.s32.totalorder %s95, %s96
      %p108 = scmp.eq.s32.totalorder %s23, 2
      %p109 = por %p107, %p108
      %p111 = scmp.ne.s32.totalorder %s96, %s110
      %p112 = scmp.eq.s32.totalorder %s23, 0
      %p113 = por %p111, %p112
      %s115 = sadd.s32 %s114, 1
      %p118 = scmp.eq.s32.totalorder %s17, 2
      %p119 = scmp.ne.s32.totalorder %s114, %s116
      %p120 = scmp.eq.s32.totalorder %s17, 0
      %p121 = por %p119, %p120
      %p122 = scmp.ne.s32.totalorder %s114, %s116
      %p123 = scmp.eq.s32.totalorder %s22, 2
      %p124 = por %p122, %p123
      %p125 = scmp.ne.s32.totalorder %s116, %s117
      %p126 = scmp.eq.s32.totalorder %s22, 0
      %p127 = por %p125, %p126
      %p128 = scmp.ne.s32.totalorder %s116, %s117
      %p129 = scmp.eq.s32.totalorder %s23, 2
      %p130 = por %p128, %p129
      %p132 = scmp.ne.s32.totalorder %s117, %s131
      %p133 = scmp.eq.s32.totalorder %s23, 0
      %p134 = por %p132, %p133
      %s136 = sadd.s32 %s135, 1
      %p139 = scmp.eq.s32.totalorder %s17, 2
      %p140 = scmp.ne.s32.totalorder %s135, %s137
      %p141 = scmp.eq.s32.totalorder %s17, 0
      %p142 = por %p140, %p141
      %p143 = scmp.ne.s32.totalorder %s135, %s137
      %p144 = scmp.eq.s32.totalorder %s22, 2
      %p145 = por %p143, %p144
      %p146 = scmp.ne.s32.totalorder %s137, %s138
      %p147 = scmp.eq.s32.totalorder %s22, 0
      %p148 = por %p146, %p147
      %p149 = scmp.ne.s32.totalorder %s137, %s138
      %p150 = scmp.eq.s32.totalorder %s23, 2
      %p151 = por %p149, %p150
      %p153 = scmp.ne.s32.totalorder %s138, %s152
      %p154 = scmp.eq.s32.totalorder %s23, 0
      %p155 = por %p153, %p154
      %s157 = sadd.s32 %s156, 1
      %p160 = scmp.eq.s32.totalorder %s17, 2
      %p161 = scmp.ne.s32.totalorder %s156, %s158
      %p162 = scmp.eq.s32.totalorder %s17, 0
      %p163 = por %p161, %p162
      %p164 = scmp.ne.s32.totalorder %s156, %s158
      %p165 = scmp.eq.s32.totalorder %s22, 2
      %p166 = por %p164, %p165
      %p167 = scmp.ne.s32.totalorder %s158, %s159
      %p168 = scmp.eq.s32.totalorder %s22, 0
      %p169 = por %p167, %p168
      %p170 = scmp.ne.s32.totalorder %s158, %s159
      %p171 = scmp.eq.s32.totalorder %s23, 2
      %p172 = por %p170, %p171
      %p174 = scmp.ne.s32.totalorder %s159, %s173
      %p175 = scmp.eq.s32.totalorder %s23, 0
      %p176 = por %p174, %p175
      %s178 = sadd.s32 %s177, 1
      %p181 = scmp.eq.s32.totalorder %s17, 2
      %p182 = scmp.ne.s32.totalorder %s177, %s179
      %p183 = scmp.eq.s32.totalorder %s17, 0
      %p184 = por %p182, %p183
      %p185 = scmp.ne.s32.totalorder %s177, %s179
      %p186 = scmp.eq.s32.totalorder %s22, 2
      %p187 = por %p185, %p186
      %p188 = scmp.ne.s32.totalorder %s179, %s180
      %p189 = scmp.eq.s32.totalorder %s22, 0
      %p190 = por %p188, %p189
      %p191 = scmp.ne.s32.totalorder %s179, %s180
      %p192 = scmp.eq.s32.totalorder %s23, 2
      %p193 = por %p191, %p192
      %p195 = scmp.ne.s32.totalorder %s180, %s194
      %p196 = scmp.eq.s32.totalorder %s23, 0
      %p197 = por %p195, %p196
      %s199 = sadd.s32 %s198, 1
      %p202 = scmp.eq.s32.totalorder %s17, 2
      %p203 = scmp.ne.s32.totalorder %s198, %s200
      %p204 = scmp.eq.s32.totalorder %s17, 0
      %p205 = por %p203, %p204
      %p206 = scmp.ne.s32.totalorder %s198, %s200
      %p207 = scmp.eq.s32.totalorder %s22, 2
      %p208 = por %p206, %p207
      %p209 = scmp.ne.s32.totalorder %s200, %s201
      %p210 = scmp.eq.s32.totalorder %s22, 0
      %p211 = por %p209, %p210
      %p212 = scmp.ne.s32.totalorder %s200, %s201
      %p213 = scmp.eq.s32.totalorder %s23, 2
      %p214 = por %p212, %p213
      %p216 = scmp.ne.s32.totalorder %s201, %s215
      %p217 = scmp.eq.s32.totalorder %s23, 0
      %p218 = por %p216, %p217
      %s220 = sadd.s32 %s219, 1
      %p223 = scmp.eq.s32.totalorder %s17, 2
      %p224 = scmp.ne.s32.totalorder %s219, %s221
      %p225 = scmp.eq.s32.totalorder %s17, 0
      %p226 = por %p224, %p225
      %p227 = scmp.ne.s32.totalorder %s219, %s221
      %p228 = scmp.eq.s32.totalorder %s22, 2
      %p229 = por %p227, %p228
      %p230 = scmp.ne.s32.totalorder %s221, %s222
      %p231 = scmp.eq.s32.totalorder %s22, 0
      %p232 = por %p230, %p231
      %p233 = scmp.ne.s32.totalorder %s221, %s222
      %p234 = scmp.eq.s32.totalorder %s23, 2
      %p235 = por %p233, %p234
      %p237 = scmp.ne.s32.totalorder %s222, %s236
      %p238 = scmp.eq.s32.totalorder %s23, 0
      %p239 = por %p237, %p238
      %s241 = sadd.s32 %s240, 1
      %p244 = scmp.eq.s32.totalorder %s17, 2
      %p245 = scmp.ne.s32.totalorder %s240, %s242
      %p246 = scmp.eq.s32.totalorder %s17, 0
      %p247 = por %p245, %p246
      %p248 = scmp.ne.s32.totalorder %s240, %s242
      %p249 = scmp.eq.s32.totalorder %s22, 2
      %p250 = por %p248, %p249
      %p251 = scmp.ne.s32.totalorder %s242, %s243
      %p252 = scmp.eq.s32.totalorder %s22, 0
      %p253 = por %p251, %p252
      %p254 = scmp.ne.s32.totalorder %s242, %s243
      %p255 = scmp.eq.s32.totalorder %s23, 2
      %p256 = por %p254, %p255
      %p258 = scmp.ne.s32.totalorder %s243, %s257
      %p259 = scmp.eq.s32.totalorder %s23, 0
      %p260 = por %p258, %p259
      %p261 = scmp.le.s32.totalorder 1, %s17
      %p262 = scmp.lt.s32.totalorder %s17, 4
      %p263 = pnand %p261, %p262
      %p264 = pneg %p263
      // Predicated region
      $region9: #{default_classifier_forward.1} parent=5 // pred_check
        _
      $region10: #{default_classifier_forward.1} parent=5 // pred_check_branch
        %266 = sbr.rel (%p263) target = $region12
      $region11: #{default_classifier_forward.1} parent=5 // pred_region
        %s267 = ssub.s32 %s17, 1
        // Predicated region
        $region13: #{default_classifier_forward.1} parent=11 // pred_check
          %p268 = pneg %p64
        $region14: #{default_classifier_forward.1} parent=11 // pred_check_branch
          %270 = sbr.rel (%p268) target = $region16
        $region15: #{default_classifier_forward.1} parent=11 // pred_region
          _
        $region16: #{default_classifier_forward.1} parent=11 // pred_fallthru
          _
        // Predicated region
        $region17: #{default_classifier_forward.1} parent=11 // pred_check
          %p271 = pneg %p85
        $region18: #{default_classifier_forward.1} parent=11 // pred_check_branch
          %273 = sbr.rel (%p271) target = $region20
        $region19: #{default_classifier_forward.1} parent=11 // pred_region
          _
        $region20: #{default_classifier_forward.1} parent=11 // pred_fallthru
          _
        // Predicated region
        $region21: #{default_classifier_forward.1} parent=11 // pred_check
          %p274 = pneg %p106
        $region22: #{default_classifier_forward.1} parent=11 // pred_check_branch
          %276 = sbr.rel (%p274) target = $region24
        $region23: #{default_classifier_forward.1} parent=11 // pred_region
          _
        $region24: #{default_classifier_forward.1} parent=11 // pred_fallthru
          _
        // Predicated region
        $region25: #{default_classifier_forward.1} parent=11 // pred_check
          %p277 = pneg %p127
        $region26: #{default_classifier_forward.1} parent=11 // pred_check_branch
          %279 = sbr.rel (%p277) target = $region28
        $region27: #{default_classifier_forward.1} parent=11 // pred_region
          _
        $region28: #{default_classifier_forward.1} parent=11 // pred_fallthru
          _
        // Predicated region
        $region29: #{default_classifier_forward.1} parent=11 // pred_check
          %p280 = pneg %p148
        $region30: #{default_classifier_forward.1} parent=11 // pred_check_branch
          %282 = sbr.rel (%p280) target = $region32
        $region31: #{default_classifier_forward.1} parent=11 // pred_region
          _
        $region32: #{default_classifier_forward.1} parent=11 // pred_fallthru
          _
        // Predicated region
        $region33: #{default_classifier_forward.1} parent=11 // pred_check
          %p283 = pneg %p169
        $region34: #{default_classifier_forward.1} parent=11 // pred_check_branch
          %285 = sbr.rel (%p283) target = $region36
        $region35: #{default_classifier_forward.1} parent=11 // pred_region
          _
        $region36: #{default_classifier_forward.1} parent=11 // pred_fallthru
          _
        // Predicated region
        $region37: #{default_classifier_forward.1} parent=11 // pred_check
          %p286 = pneg %p190
        $region38: #{default_classifier_forward.1} parent=11 // pred_check_branch
          %288 = sbr.rel (%p286) target = $region40
        $region39: #{default_classifier_forward.1} parent=11 // pred_region
          _
        $region40: #{default_classifier_forward.1} parent=11 // pred_fallthru
          _
        // Predicated region
        $region41: #{default_classifier_forward.1} parent=11 // pred_check
          %p289 = pneg %p211
        $region42: #{default_classifier_forward.1} parent=11 // pred_check_branch
          %291 = sbr.rel (%p289) target = $region44
        $region43: #{default_classifier_forward.1} parent=11 // pred_region
          _
        $region44: #{default_classifier_forward.1} parent=11 // pred_fallthru
          _
        // Predicated region
        $region45: #{default_classifier_forward.1} parent=11 // pred_check
          %p292 = pneg %p232
        $region46: #{default_classifier_forward.1} parent=11 // pred_check_branch
          %294 = sbr.rel (%p292) target = $region48
        $region47: #{default_classifier_forward.1} parent=11 // pred_region
          _
        $region48: #{default_classifier_forward.1} parent=11 // pred_fallthru
          _
      $region12: #{default_classifier_forward.1} parent=5 // pred_fallthru
        _
      %p295 = scmp.lt.s32.totalorder %s17, 3
      // Predicated region
      $region49: #{default_classifier_forward.1} parent=5 // pred_check
        %p296 = pneg %p295
      $region50: #{default_classifier_forward.1} parent=5 // pred_check_branch
        %298 = sbr.rel (%p296) target = $region52
      $region51: #{default_classifier_forward.1} parent=5 // pred_region
        // Predicated region
        $region53: #{default_classifier_forward.1} parent=51 // pred_check
          %p299 = pneg %p37
        $region54: #{default_classifier_forward.1} parent=51 // pred_check_branch
          %301 = sbr.rel (%p299) target = $region56
        $region55: #{default_classifier_forward.1} parent=51 // pred_region
          %s302 = smul.u32 16, %s17
          %p303 = scmp.lt.s32.totalorder %s302, 47
          %s304 = scalar_select %p303, %s302, 47
          %s305 = smul.addr %s304, 2
          %s306 = smul.addr %s305, 4
          %s307 = scalar_lea.vmem %s0, %s306
          %s308 = smul.u32 16, %s17
        $region56: #{default_classifier_forward.1} parent=51 // pred_fallthru
          _
      $region52: #{default_classifier_forward.1} parent=5 // pred_fallthru
        _
      %p309 = scmp.le.s32.totalorder 1, %s17
      %p310 = scmp.lt.s32.totalorder %s17, 4
      %p311 = pnand %p309, %p310
      %p312 = pneg %p311
      // Predicated region
      $region57: #{default_classifier_forward.1} parent=5 // pred_check
        _
      $region58: #{default_classifier_forward.1} parent=5 // pred_check_branch
        %314 = sbr.rel (%p311) target = $region60
      $region59: #{default_classifier_forward.1} parent=5 // pred_region
        %s315 = ssub.s32 %s17, 1
        %s316 = smul.u32 16, %s22
        %p317 = scmp.lt.s32.totalorder %s316, 47
        %s318 = scalar_select %p317, %s316, 47
        %s319 = smul.addr %s318, 2
        %s320 = smul.addr %s319, 4
        %s321 = scalar_lea.vmem %s0, %s320
        %p322 = pneg %p43
        %p323 = pneg %p40
        %p324 = pneg %p64
        %p325 = pneg %p61
        %p326 = pneg %p85
        %p327 = pneg %p82
        %p328 = pneg %p106
        %p329 = pneg %p103
        %p330 = pneg %p127
        %p331 = pneg %p124
        %p332 = pneg %p148
        %p333 = pneg %p145
        %p334 = pneg %p169
        %p335 = pneg %p166
        %p336 = pneg %p190
        %p337 = pneg %p187
        %p338 = pneg %p211
        %p339 = pneg %p208
        %p340 = pneg %p232
        %p341 = pneg %p229
        %p342 = pneg %p253
        %p343 = pneg %p250
        %s344 = smul.u32 16, %s22
        %p345 = scmp.lt.s32.totalorder %s344, 47
        %s346 = scalar_select %p345, %s344, 47
        %s347 = smul.addr %s346, 2
        %s348 = smul.addr %s347, 4
        %s349 = scalar_lea.vmem %s0, %s348
        %s350 = smul.u32 16, %s22
        %p352 = scmp.eq.s32.totalorder %s22, 0
        // Predicated region
        $region61: #{default_classifier_forward.1} parent=59 // pred_check
          %p353 = pneg %p352
        $region62: #{default_classifier_forward.1} parent=59 // pred_check_branch
          %355 = sbr.rel (%p353) target = $region64
        $region63: #{default_classifier_forward.1} parent=59 // pred_region
          %356 = vst [vmem:[#allocation2] sm:$0xff] 0.0
          %357 = vst [vmem:[#allocation2 + $0x8] sm:$0xff] 0.0
        $region64: #{default_classifier_forward.1} parent=59 // pred_fallthru
          _
        %s358 = smul.u32 %s22, 128
        %v359 = vlaneseq
        %v360 = vand.u32 %v359, 127
        %v361 = vstv %s358
        %v362 = vadd.s32 %v361, %v360
        %v363 = vld [vmem:[%s1] sm:$0xff]
        %364 = vset.pattern.permute.xlu0 0
        %365 = vperm.xlu0 %364, %v363
        %v366 = vpop.permute.xlu0 %365
        %vm367 = vcmp.ge.s32.totalorder %v362, %v366
        %v368 = vld [vmem:[%s2] sm:$0xff]
        %369 = vset.pattern.permute.xlu0 0
        %370 = vperm.xlu0 %369, %v368
        %v371 = vpop.permute.xlu0 %370
        %vm372 = vcmp.lt.s32.totalorder %v362, %v371
        %vm373 = vmand %vm367, %vm372
        %v374 = vsel %vm373, 1, 0
        %v375 = vcvt.s32.f32 %v374
        %v376 = vpack.c.bf16 %v375, %v375
        %v377 = vld [vmem:[#allocation2] sm:$0xff]
        %v378 = vld [vmem:[#allocation2 + $0x8] sm:$0xff]
        %v379 = vld [vmem:[%s349] sm:$0xff]
        %v380 = vld [vmem:[%s349 + $0x8] sm:$0xff]
        %v381 = vld [vmem:[%s349 + $0x10] sm:$0xff]
        %v382 = vld [vmem:[%s349 + $0x18] sm:$0xff]
        %v383 = vld [vmem:[%s349 + $0x20] sm:$0xff]
        %v384 = vld [vmem:[%s349 + $0x28] sm:$0xff]
        %v385 = vld [vmem:[%s349 + $0x30] sm:$0xff]
        %v386 = vld [vmem:[%s349 + $0x38] sm:$0xff]
        %v387 = vld [vmem:[%s349 + $0x40] sm:$0xff]
        %v388 = vld [vmem:[%s349 + $0x48] sm:$0xff]
        %v389 = vld [vmem:[%s349 + $0x50] sm:$0xff]
        %v390 = vld [vmem:[%s349 + $0x58] sm:$0xff]
        %v391 = vld [vmem:[%s349 + $0x60] sm:$0xff]
        %v392 = vld [vmem:[%s349 + $0x68] sm:$0xff]
        %v393 = vld [vmem:[%s349 + $0x70] sm:$0xff]
        %v394 = vld [vmem:[%s349 + $0x78] sm:$0xff]
        %v411 = vunpack.c.l.b16 %v379
        %v412 = vunpack.c.h.b16 %v379
        %v413 = vunpack.c.l.b16 %v380
        %v414 = vunpack.c.h.b16 %v380
        %v415 = vunpack.c.l.b16 %v381
        %v416 = vunpack.c.h.b16 %v381
        %v417 = vunpack.c.l.b16 %v382
        %v418 = vunpack.c.h.b16 %v382
        %v419 = vunpack.c.l.b16 %v383
        %v420 = vunpack.c.h.b16 %v383
        %v421 = vunpack.c.l.b16 %v384
        %v422 = vunpack.c.h.b16 %v384
        %v423 = vunpack.c.l.b16 %v385
        %v424 = vunpack.c.h.b16 %v385
        %v425 = vunpack.c.l.b16 %v386
        %v426 = vunpack.c.h.b16 %v386
        %v427 = vunpack.c.l.b16 %v387
        %v428 = vunpack.c.h.b16 %v387
        %v429 = vunpack.c.l.b16 %v388
        %v430 = vunpack.c.h.b16 %v388
        %v431 = vunpack.c.l.b16 %v389
        %v432 = vunpack.c.h.b16 %v389
        %v433 = vunpack.c.l.b16 %v390
        %v434 = vunpack.c.h.b16 %v390
        %v435 = vunpack.c.l.b16 %v391
        %v436 = vunpack.c.h.b16 %v391
        %v437 = vunpack.c.l.b16 %v392
        %v438 = vunpack.c.h.b16 %v392
        %v439 = vunpack.c.l.b16 %v393
        %v440 = vunpack.c.h.b16 %v393
        %v441 = vunpack.c.l.b16 %v394
        %v442 = vunpack.c.h.b16 %v394
        %v443 = vpack.c.b16 %v413, %v411
        %v444 = vpack.c.b16 %v414, %v412
        %v445 = vpack.c.b16 %v417, %v415
        %v446 = vpack.c.b16 %v418, %v416
        %v447 = vpack.c.b16 %v421, %v419
        %v448 = vpack.c.b16 %v422, %v420
        %v449 = vpack.c.b16 %v425, %v423
        %v450 = vpack.c.b16 %v426, %v424
        %v451 = vpack.c.b16 %v429, %v427
        %v452 = vpack.c.b16 %v430, %v428
        %v453 = vpack.c.b16 %v433, %v431
        %v454 = vpack.c.b16 %v434, %v432
        %v455 = vpack.c.b16 %v437, %v435
        %v456 = vpack.c.b16 %v438, %v436
        %v457 = vpack.c.b16 %v441, %v439
        %v458 = vpack.c.b16 %v442, %v440
        %475 = vmatprep.subr.bf16.mxu0 %v444
        %476 = vmatpush1.bf16.msra.mxu0 %v443
        %477 = vmatprep.subr.bf16.mxu0 %v446
        %478 = vmatpush1.bf16.msra.mxu0 %v445
        %479 = vmatprep.subr.bf16.mxu0 %v448
        %480 = vmatpush1.bf16.msra.mxu0 %v447
        %481 = vmatprep.subr.bf16.mxu0 %v450
        %482 = vmatpush1.bf16.msra.mxu0 %v449
        %483 = vmatprep.subr.bf16.mxu0 %v452
        %484 = vmatpush1.bf16.msra.mxu0 %v451
        %485 = vmatprep.subr.bf16.mxu0 %v454
        %486 = vmatpush1.bf16.msra.mxu0 %v453
        %487 = vmatprep.subr.bf16.mxu0 %v456
        %488 = vmatpush1.bf16.msra.mxu0 %v455
        %489 = vmatprep.subr.bf16.mxu0 %v458
        %490 = vmatpush1.bf16.msra.mxu0 %v457
        %491 = vmatprep.subr.bf16.mxu0 0
        %492 = vmatpush1.bf16.msra.mxu0 0
        %493 = vmatprep.subr.bf16.mxu0 0
        %494 = vmatpush1.bf16.msra.mxu0 0
        %495 = vmatprep.subr.bf16.mxu0 0
        %496 = vmatpush1.bf16.msra.mxu0 0
        %497 = vmatprep.subr.bf16.mxu0 0
        %498 = vmatpush1.bf16.msra.mxu0 0
        %499 = vmatprep.subr.bf16.mxu0 0
        %500 = vmatpush1.bf16.msra.mxu0 0
        %501 = vmatprep.subr.bf16.mxu0 0
        %502 = vmatpush1.bf16.msra.mxu0 0
        %503 = vmatprep.subr.bf16.mxu0 0
        %504 = vmatpush1.bf16.msra.mxu0 0
        %505 = vmatprep.subr.bf16.mxu0 0
        %506 = vmatpush1.bf16.msra.mxu0 0
        %507 = vmatprep.mubr.bf16.mxu0 0
        %508 = vmatmul.mubr.bf16.gmra.mrb[0].mxu0 %v376
        %v509 = vpop.f32.mrb[0].mxu0
        %v510 = vadd.f32 0.0, %v509
        %v511 = vpop.f32.mrb[0].mxu0
        %v512 = vadd.f32 0.0, %v511
        %v513 = vpop.f32.mrb[0].mxu0
        %v514 = vpop.f32.mrb[0].mxu0
        %515 = vdwg.mxu0
        %v516 = vadd.f32 %v377, %v510
        %v517 = vadd.f32 %v378, %v512
        %518 = vst [vmem:[#allocation2] sm:$0xff] %v516
        %519 = vst [vmem:[#allocation2 + $0x8] sm:$0xff] %v517
        %p520 = scmp.eq.s32.totalorder %s22, 2
        // Predicated region
        $region65: #{default_classifier_forward.1} parent=59 // pred_check
          %p521 = pneg %p520
        $region66: #{default_classifier_forward.1} parent=59 // pred_check_branch
          %523 = sbr.rel (%p521) target = $region68
        $region67: #{default_classifier_forward.1} parent=59 // pred_region
          %v524 = vld [vmem:[#allocation2] sm:$0xff]
          %v525 = vld [vmem:[#allocation2 + $0x8] sm:$0xff]
          %v526 = vld [vmem:[%s3] sm:$0xff]
          %528 = vset.pattern.permute.xlu0 0
          %529 = vperm.xlu0 %528, %v526
          %v530 = vpop.permute.xlu0 %529
          %v532 = vmul.f32 %v524, %v530
          %v533 = vmul.f32 %v525, %v530
          %v534 = vpack.c.bf16 %v532, %v532
          %v535 = vpack.c.bf16 %v533, %v533
          %v536 = vld [vmem:[%s4] sm:$0xff]
          %v537 = vld [vmem:[%s4 + $0x8] sm:$0xff]
          %v538 = vld [vmem:[%s4 + $0x10] sm:$0xff]
          %v539 = vld [vmem:[%s4 + $0x18] sm:$0xff]
          %v540 = vld [vmem:[%s4 + $0x20] sm:$0xff]
          %v541 = vld [vmem:[%s4 + $0x28] sm:$0xff]
          %v542 = vld [vmem:[%s4 + $0x30] sm:$0xff]
          %v543 = vld [vmem:[%s4 + $0x38] sm:$0xff]
          %v544 = vld [vmem:[%s4 + $0x40] sm:$0xff]
          %v545 = vld [vmem:[%s4 + $0x48] sm:$0xff]
          %v546 = vld [vmem:[%s4 + $0x50] sm:$0xff]
          %v547 = vld [vmem:[%s4 + $0x58] sm:$0xff]
          %v548 = vld [vmem:[%s4 + $0x60] sm:$0xff]
          %v549 = vld [vmem:[%s4 + $0x68] sm:$0xff]
          %v550 = vld [vmem:[%s4 + $0x70] sm:$0xff]
          %v551 = vld [vmem:[%s4 + $0x78] sm:$0xff]
          %v552 = vld [vmem:[%s4 + $0x80] sm:$0xff]
          %v553 = vld [vmem:[%s4 + $0x88] sm:$0xff]
          %v554 = vld [vmem:[%s4 + $0x90] sm:$0xff]
          %v555 = vld [vmem:[%s4 + $0x98] sm:$0xff]
          %v556 = vld [vmem:[%s4 + $0xa0] sm:$0xff]
          %v557 = vld [vmem:[%s4 + $0xa8] sm:$0xff]
          %v558 = vld [vmem:[%s4 + $0xb0] sm:$0xff]
          %v559 = vld [vmem:[%s4 + $0xb8] sm:$0xff]
          %v560 = vld [vmem:[%s4 + $0xc0] sm:$0xff]
          %v561 = vld [vmem:[%s4 + $0xc8] sm:$0xff]
          %v562 = vld [vmem:[%s4 + $0xd0] sm:$0xff]
          %v563 = vld [vmem:[%s4 + $0xd8] sm:$0xff]
          %v564 = vld [vmem:[%s4 + $0xe0] sm:$0xff]
          %v565 = vld [vmem:[%s4 + $0xe8] sm:$0xff]
          %v566 = vld [vmem:[%s4 + $0xf0] sm:$0xff]
          %v567 = vld [vmem:[%s4 + $0xf8] sm:$0xff]
          %v568 = vld [vmem:[%s5] sm:$0x3]
          %v570 = vlaneseq
          %v571 = vshrl.u32 %v570, 7
          %v572 = vsub.s32 0, %v571
          %v573 = vrot.slane %v568, %v572
          %v574 = vlaneseq
          %v575 = vshrl.u32 %v574, 7
          %v576 = vsub.s32 1, %v575
          %v577 = vrot.slane %v568, %v576
          %v612 = vunpack.c.l.b16 %v536
          %v613 = vunpack.c.h.b16 %v536
          %v614 = vunpack.c.l.b16 %v537
          %v615 = vunpack.c.h.b16 %v537
          %v616 = vunpack.c.l.b16 %v538
          %v617 = vunpack.c.h.b16 %v538
          %v618 = vunpack.c.l.b16 %v539
          %v619 = vunpack.c.h.b16 %v539
          %v620 = vunpack.c.l.b16 %v540
          %v621 = vunpack.c.h.b16 %v540
          %v622 = vunpack.c.l.b16 %v541
          %v623 = vunpack.c.h.b16 %v541
          %v624 = vunpack.c.l.b16 %v542
          %v625 = vunpack.c.h.b16 %v542
          %v626 = vunpack.c.l.b16 %v543
          %v627 = vunpack.c.h.b16 %v543
          %v628 = vunpack.c.l.b16 %v544
          %v629 = vunpack.c.h.b16 %v544
          %v630 = vunpack.c.l.b16 %v545
          %v631 = vunpack.c.h.b16 %v545
          %v632 = vunpack.c.l.b16 %v546
          %v633 = vunpack.c.h.b16 %v546
          %v634 = vunpack.c.l.b16 %v547
          %v635 = vunpack.c.h.b16 %v547
          %v636 = vunpack.c.l.b16 %v548
          %v637 = vunpack.c.h.b16 %v548
          %v638 = vunpack.c.l.b16 %v549
          %v639 = vunpack.c.h.b16 %v549
          %v640 = vunpack.c.l.b16 %v550
          %v641 = vunpack.c.h.b16 %v550
          %v642 = vunpack.c.l.b16 %v551
          %v643 = vunpack.c.h.b16 %v551
          %v644 = vunpack.c.l.b16 %v552
          %v645 = vunpack.c.h.b16 %v552
          %v646 = vunpack.c.l.b16 %v553
          %v647 = vunpack.c.h.b16 %v553
          %v648 = vunpack.c.l.b16 %v554
          %v649 = vunpack.c.h.b16 %v554
          %v650 = vunpack.c.l.b16 %v555
          %v651 = vunpack.c.h.b16 %v555
          %v652 = vunpack.c.l.b16 %v556
          %v653 = vunpack.c.h.b16 %v556
          %v654 = vunpack.c.l.b16 %v557
          %v655 = vunpack.c.h.b16 %v557
          %v656 = vunpack.c.l.b16 %v558
          %v657 = vunpack.c.h.b16 %v558
          %v658 = vunpack.c.l.b16 %v559
          %v659 = vunpack.c.h.b16 %v559
          %v660 = vunpack.c.l.b16 %v560
          %v661 = vunpack.c.h.b16 %v560
          %v662 = vunpack.c.l.b16 %v561
          %v663 = vunpack.c.h.b16 %v561
          %v664 = vunpack.c.l.b16 %v562
          %v665 = vunpack.c.h.b16 %v562
          %v666 = vunpack.c.l.b16 %v563
          %v667 = vunpack.c.h.b16 %v563
          %v668 = vunpack.c.l.b16 %v564
          %v669 = vunpack.c.h.b16 %v564
          %v670 = vunpack.c.l.b16 %v565
          %v671 = vunpack.c.h.b16 %v565
          %v672 = vunpack.c.l.b16 %v566
          %v673 = vunpack.c.h.b16 %v566
          %v674 = vunpack.c.l.b16 %v567
          %v675 = vunpack.c.h.b16 %v567
          %v676 = vpack.c.b16 %v614, %v612
          %v677 = vpack.c.b16 %v615, %v613
          %v678 = vpack.c.b16 %v618, %v616
          %v679 = vpack.c.b16 %v619, %v617
          %v680 = vpack.c.b16 %v622, %v620
          %v681 = vpack.c.b16 %v623, %v621
          %v682 = vpack.c.b16 %v626, %v624
          %v683 = vpack.c.b16 %v627, %v625
          %v684 = vpack.c.b16 %v630, %v628
          %v685 = vpack.c.b16 %v631, %v629
          %v686 = vpack.c.b16 %v634, %v632
          %v687 = vpack.c.b16 %v635, %v633
          %v688 = vpack.c.b16 %v638, %v636
          %v689 = vpack.c.b16 %v639, %v637
          %v690 = vpack.c.b16 %v642, %v640
          %v691 = vpack.c.b16 %v643, %v641
          %v692 = vpack.c.b16 %v646, %v644
          %v693 = vpack.c.b16 %v647, %v645
          %v694 = vpack.c.b16 %v650, %v648
          %v695 = vpack.c.b16 %v651, %v649
          %v696 = vpack.c.b16 %v654, %v652
          %v697 = vpack.c.b16 %v655, %v653
          %v698 = vpack.c.b16 %v658, %v656
          %v699 = vpack.c.b16 %v659, %v657
          %v700 = vpack.c.b16 %v662, %v660
          %v701 = vpack.c.b16 %v663, %v661
          %v702 = vpack.c.b16 %v666, %v664
          %v703 = vpack.c.b16 %v667, %v665
          %v704 = vpack.c.b16 %v670, %v668
          %v705 = vpack.c.b16 %v671, %v669
          %v706 = vpack.c.b16 %v674, %v672
          %v707 = vpack.c.b16 %v675, %v673
          %740 = vmatprep.subr.bf16.mxu0 %v677
          %741 = vmatpush1.bf16.msra.mxu0 %v676
          %742 = vmatprep.subr.bf16.mxu0 %v679
          %743 = vmatpush1.bf16.msra.mxu0 %v678
          %744 = vmatprep.subr.bf16.mxu0 %v681
          %745 = vmatpush1.bf16.msra.mxu0 %v680
          %746 = vmatprep.subr.bf16.mxu0 %v683
          %747 = vmatpush1.bf16.msra.mxu0 %v682
          %748 = vmatprep.subr.bf16.mxu0 %v685
          %749 = vmatpush1.bf16.msra.mxu0 %v684
          %750 = vmatprep.subr.bf16.mxu0 %v687
          %751 = vmatpush1.bf16.msra.mxu0 %v686
          %752 = vmatprep.subr.bf16.mxu0 %v689
          %753 = vmatpush1.bf16.msra.mxu0 %v688
          %754 = vmatprep.subr.bf16.mxu0 %v691
          %755 = vmatpush1.bf16.msra.mxu0 %v690
          %756 = vmatprep.subr.bf16.mxu0 %v693
          %757 = vmatpush1.bf16.msra.mxu0 %v692
          %758 = vmatprep.subr.bf16.mxu0 %v695
          %759 = vmatpush1.bf16.msra.mxu0 %v694
          %760 = vmatprep.subr.bf16.mxu0 %v697
          %761 = vmatpush1.bf16.msra.mxu0 %v696
          %762 = vmatprep.subr.bf16.mxu0 %v699
          %763 = vmatpush1.bf16.msra.mxu0 %v698
          %764 = vmatprep.subr.bf16.mxu0 %v701
          %765 = vmatpush1.bf16.msra.mxu0 %v700
          %766 = vmatprep.subr.bf16.mxu0 %v703
          %767 = vmatpush1.bf16.msra.mxu0 %v702
          %768 = vmatprep.subr.bf16.mxu0 %v705
          %769 = vmatpush1.bf16.msra.mxu0 %v704
          %770 = vmatprep.subr.bf16.mxu0 %v707
          %771 = vmatpush1.bf16.msra.mxu0 %v706
          %772 = vmatprep.mubr.bf16.mxu0 %v535
          %773 = vmatmul.mubr.bf16.gmra.mrb[0].mxu0 %v534
          %v774 = vpop.f32.mrb[0].mxu0
          %v775 = vadd.f32 %v573, %v774
          %v776 = vpop.f32.mrb[0].mxu0
          %v777 = vadd.f32 %v577, %v776
          %v778 = vpop.f32.mrb[0].mxu0
          %v779 = vpop.f32.mrb[0].mxu0
          %780 = vdwg.mxu0
          %v781 = vmax.f32 %v775, 0.0
          %v782 = vmax.f32 %v777, 0.0
          %v783 = vpack.c.bf16 %v781, %v781
          %v784 = vpack.c.bf16 %v782, %v782
          %v785 = vld [vmem:[%s6] sm:$0xf]
          %v786 = vld [vmem:[%s6 + $0x4] sm:$0xf]
          %v787 = vld [vmem:[%s6 + $0x8] sm:$0xf]
          %v788 = vld [vmem:[%s6 + $0xc] sm:$0xf]
          %v789 = vld [vmem:[%s6 + $0x10] sm:$0xf]
          %v790 = vld [vmem:[%s6 + $0x14] sm:$0xf]
          %v791 = vld [vmem:[%s6 + $0x18] sm:$0xf]
          %v792 = vld [vmem:[%s6 + $0x1c] sm:$0xf]
          %v793 = vld [vmem:[%s6 + $0x20] sm:$0xf]
          %v794 = vld [vmem:[%s6 + $0x24] sm:$0xf]
          %v795 = vld [vmem:[%s6 + $0x28] sm:$0xf]
          %v796 = vld [vmem:[%s6 + $0x2c] sm:$0xf]
          %v797 = vld [vmem:[%s6 + $0x30] sm:$0xf]
          %v798 = vld [vmem:[%s6 + $0x34] sm:$0xf]
          %v799 = vld [vmem:[%s6 + $0x38] sm:$0xf]
          %v800 = vld [vmem:[%s6 + $0x3c] sm:$0xf]
          %v801 = vld [vmem:[%s6 + $0x40] sm:$0xf]
          %v802 = vld [vmem:[%s6 + $0x44] sm:$0xf]
          %v803 = vld [vmem:[%s6 + $0x48] sm:$0xf]
          %v804 = vld [vmem:[%s6 + $0x4c] sm:$0xf]
          %v805 = vld [vmem:[%s6 + $0x50] sm:$0xf]
          %v806 = vld [vmem:[%s6 + $0x54] sm:$0xf]
          %v807 = vld [vmem:[%s6 + $0x58] sm:$0xf]
          %v808 = vld [vmem:[%s6 + $0x5c] sm:$0xf]
          %v809 = vld [vmem:[%s6 + $0x60] sm:$0xf]
          %v810 = vld [vmem:[%s6 + $0x64] sm:$0xf]
          %v811 = vld [vmem:[%s6 + $0x68] sm:$0xf]
          %v812 = vld [vmem:[%s6 + $0x6c] sm:$0xf]
          %v813 = vld [vmem:[%s6 + $0x70] sm:$0xf]
          %v814 = vld [vmem:[%s6 + $0x74] sm:$0xf]
          %v815 = vld [vmem:[%s6 + $0x78] sm:$0xf]
          %v816 = vld [vmem:[%s6 + $0x7c] sm:$0xf]
          %v817 = vld [vmem:[%s7] sm:$0x1]
          %v819 = vlaneseq
          %v820 = vshrl.u32 %v819, 7
          %v821 = vsub.s32 0, %v820
          %v822 = vrot.slane %v817, %v821
          %v856 = vunpack.c.l.b16 %v785
          %v857 = vunpack.c.l.b16 %v786
          %v858 = vunpack.c.l.b16 %v787
          %v859 = vunpack.c.l.b16 %v788
          %v860 = vunpack.c.l.b16 %v789
          %v861 = vunpack.c.l.b16 %v790
          %v862 = vunpack.c.l.b16 %v791
          %v863 = vunpack.c.l.b16 %v792
          %v864 = vunpack.c.l.b16 %v793
          %v865 = vunpack.c.l.b16 %v794
          %v866 = vunpack.c.l.b16 %v795
          %v867 = vunpack.c.l.b16 %v796
          %v868 = vunpack.c.l.b16 %v797
          %v869 = vunpack.c.l.b16 %v798
          %v870 = vunpack.c.l.b16 %v799
          %v871 = vunpack.c.l.b16 %v800
          %v872 = vunpack.c.l.b16 %v801
          %v873 = vunpack.c.l.b16 %v802
          %v874 = vunpack.c.l.b16 %v803
          %v875 = vunpack.c.l.b16 %v804
          %v876 = vunpack.c.l.b16 %v805
          %v877 = vunpack.c.l.b16 %v806
          %v878 = vunpack.c.l.b16 %v807
          %v879 = vunpack.c.l.b16 %v808
          %v880 = vunpack.c.l.b16 %v809
          %v881 = vunpack.c.l.b16 %v810
          %v882 = vunpack.c.l.b16 %v811
          %v883 = vunpack.c.l.b16 %v812
          %v884 = vunpack.c.l.b16 %v813
          %v885 = vunpack.c.l.b16 %v814
          %v886 = vunpack.c.l.b16 %v815
          %v887 = vunpack.c.l.b16 %v816
          %v888 = vpack.c.b16 %v857, %v856
          %v889 = vpack.c.b16 %v859, %v858
          %v890 = vpack.c.b16 %v861, %v860
          %v891 = vpack.c.b16 %v863, %v862
          %v892 = vpack.c.b16 %v865, %v864
          %v893 = vpack.c.b16 %v867, %v866
          %v894 = vpack.c.b16 %v869, %v868
          %v895 = vpack.c.b16 %v871, %v870
          %v896 = vpack.c.b16 %v873, %v872
          %v897 = vpack.c.b16 %v875, %v874
          %v898 = vpack.c.b16 %v877, %v876
          %v899 = vpack.c.b16 %v879, %v878
          %v900 = vpack.c.b16 %v881, %v880
          %v901 = vpack.c.b16 %v883, %v882
          %v902 = vpack.c.b16 %v885, %v884
          %v903 = vpack.c.b16 %v887, %v886
          %920 = vmatprep.subr.bf16.mxu0 0
          %921 = vmatpush1.bf16.msra.mxu0 %v888
          %922 = vmatprep.subr.bf16.mxu0 0
          %923 = vmatpush1.bf16.msra.mxu0 %v889
          %924 = vmatprep.subr.bf16.mxu0 0
          %925 = vmatpush1.bf16.msra.mxu0 %v890
          %926 = vmatprep.subr.bf16.mxu0 0
          %927 = vmatpush1.bf16.msra.mxu0 %v891
          %928 = vmatprep.subr.bf16.mxu0 0
          %929 = vmatpush1.bf16.msra.mxu0 %v892
          %930 = vmatprep.subr.bf16.mxu0 0
          %931 = vmatpush1.bf16.msra.mxu0 %v893
          %932 = vmatprep.subr.bf16.mxu0 0
          %933 = vmatpush1.bf16.msra.mxu0 %v894
          %934 = vmatprep.subr.bf16.mxu0 0
          %935 = vmatpush1.bf16.msra.mxu0 %v895
          %936 = vmatprep.subr.bf16.mxu0 0
          %937 = vmatpush1.bf16.msra.mxu0 %v896
          %938 = vmatprep.subr.bf16.mxu0 0
          %939 = vmatpush1.bf16.msra.mxu0 %v897
          %940 = vmatprep.subr.bf16.mxu0 0
          %941 = vmatpush1.bf16.msra.mxu0 %v898
          %942 = vmatprep.subr.bf16.mxu0 0
          %943 = vmatpush1.bf16.msra.mxu0 %v899
          %944 = vmatprep.subr.bf16.mxu0 0
          %945 = vmatpush1.bf16.msra.mxu0 %v900
          %946 = vmatprep.subr.bf16.mxu0 0
          %947 = vmatpush1.bf16.msra.mxu0 %v901
          %948 = vmatprep.subr.bf16.mxu0 0
          %949 = vmatpush1.bf16.msra.mxu0 %v902
          %950 = vmatprep.subr.bf16.mxu0 0
          %951 = vmatpush1.bf16.msra.mxu0 %v903
          %952 = vmatprep.mubr.bf16.mxu0 %v784
          %953 = vmatmul.mubr.bf16.gmra.mrb[0].mxu0 %v783
          %v954 = vpop.f32.mrb[0].mxu0
          %v955 = vadd.f32 %v822, %v954
          %v956 = vpop.f32.mrb[0].mxu0
          %v957 = vpop.f32.mrb[0].mxu0
          %v958 = vpop.f32.mrb[0].mxu0
          %959 = vdwg.mxu0
          %v960 = vmax.f32 %v955, 0.0
          %v961 = vpack.c.bf16 %v960, %v960
          %v962 = vld [vmem:[%s8] sm:$0xf]
          %v963 = vld [vmem:[%s8 + $0x4] sm:$0xf]
          %v964 = vld [vmem:[%s8 + $0x8] sm:$0xf]
          %v965 = vld [vmem:[%s8 + $0xc] sm:$0xf]
          %v966 = vld [vmem:[%s8 + $0x10] sm:$0xf]
          %v967 = vld [vmem:[%s8 + $0x14] sm:$0xf]
          %v968 = vld [vmem:[%s8 + $0x18] sm:$0xf]
          %v969 = vld [vmem:[%s8 + $0x1c] sm:$0xf]
          %v970 = vld [vmem:[%s8 + $0x20] sm:$0xf]
          %v971 = vld [vmem:[%s8 + $0x24] sm:$0xf]
          %v972 = vld [vmem:[%s8 + $0x28] sm:$0xf]
          %v973 = vld [vmem:[%s8 + $0x2c] sm:$0xf]
          %v974 = vld [vmem:[%s8 + $0x30] sm:$0xf]
          %v975 = vld [vmem:[%s8 + $0x34] sm:$0xf]
          %v976 = vld [vmem:[%s8 + $0x38] sm:$0xf]
          %v977 = vld [vmem:[%s8 + $0x3c] sm:$0xf]
          %v978 = vld [vmem:[%s9] sm:$0x1]
          %v980 = vlaneseq
          %v981 = vshrl.u32 %v980, 7
          %v982 = vsub.s32 0, %v981
          %v983 = vrot.slane %v978, %v982
          %v1001 = vunpack.c.l.b16 %v962
          %v1002 = vunpack.c.l.b16 %v963
          %v1003 = vunpack.c.l.b16 %v964
          %v1004 = vunpack.c.l.b16 %v965
          %v1005 = vunpack.c.l.b16 %v966
          %v1006 = vunpack.c.l.b16 %v967
          %v1007 = vunpack.c.l.b16 %v968
          %v1008 = vunpack.c.l.b16 %v969
          %v1009 = vunpack.c.l.b16 %v970
          %v1010 = vunpack.c.l.b16 %v971
          %v1011 = vunpack.c.l.b16 %v972
          %v1012 = vunpack.c.l.b16 %v973
          %v1013 = vunpack.c.l.b16 %v974
          %v1014 = vunpack.c.l.b16 %v975
          %v1015 = vunpack.c.l.b16 %v976
          %v1016 = vunpack.c.l.b16 %v977
          %v1017 = vpack.c.b16 %v1002, %v1001
          %v1018 = vpack.c.b16 %v1004, %v1003
          %v1019 = vpack.c.b16 %v1006, %v1005
          %v1020 = vpack.c.b16 %v1008, %v1007
          %v1021 = vpack.c.b16 %v1010, %v1009
          %v1022 = vpack.c.b16 %v1012, %v1011
          %v1023 = vpack.c.b16 %v1014, %v1013
          %v1024 = vpack.c.b16 %v1016, %v1015
          %1033 = vmatprep.subr.bf16.mxu0 0
          %1034 = vmatpush1.bf16.msra.mxu0 %v1017
          %1035 = vmatprep.subr.bf16.mxu0 0
          %1036 = vmatpush1.bf16.msra.mxu0 %v1018
          %1037 = vmatprep.subr.bf16.mxu0 0
          %1038 = vmatpush1.bf16.msra.mxu0 %v1019
          %1039 = vmatprep.subr.bf16.mxu0 0
          %1040 = vmatpush1.bf16.msra.mxu0 %v1020
          %1041 = vmatprep.subr.bf16.mxu0 0
          %1042 = vmatpush1.bf16.msra.mxu0 %v1021
          %1043 = vmatprep.subr.bf16.mxu0 0
          %1044 = vmatpush1.bf16.msra.mxu0 %v1022
          %1045 = vmatprep.subr.bf16.mxu0 0
          %1046 = vmatpush1.bf16.msra.mxu0 %v1023
          %1047 = vmatprep.subr.bf16.mxu0 0
          %1048 = vmatpush1.bf16.msra.mxu0 %v1024
          %1049 = vmatprep.subr.bf16.mxu0 0
          %1050 = vmatpush1.bf16.msra.mxu0 0
          %1051 = vmatprep.subr.bf16.mxu0 0
          %1052 = vmatpush1.bf16.msra.mxu0 0
          %1053 = vmatprep.subr.bf16.mxu0 0
          %1054 = vmatpush1.bf16.msra.mxu0 0
          %1055 = vmatprep.subr.bf16.mxu0 0
          %1056 = vmatpush1.bf16.msra.mxu0 0
          %1057 = vmatprep.subr.bf16.mxu0 0
          %1058 = vmatpush1.bf16.msra.mxu0 0
          %1059 = vmatprep.subr.bf16.mxu0 0
          %1060 = vmatpush1.bf16.msra.mxu0 0
          %1061 = vmatprep.subr.bf16.mxu0 0
          %1062 = vmatpush1.bf16.msra.mxu0 0
          %1063 = vmatprep.subr.bf16.mxu0 0
          %1064 = vmatpush1.bf16.msra.mxu0 0
          %1065 = vmatprep.mubr.bf16.mxu0 0
          %1066 = vmatmul.mubr.bf16.gmra.mrb[0].mxu0 %v961
          %v1067 = vpop.f32.mrb[0].mxu0
          %v1068 = vadd.f32 %v983, %v1067
          %v1069 = vpop.f32.mrb[0].mxu0
          %v1070 = vpop.f32.mrb[0].mxu0
          %v1071 = vpop.f32.mrb[0].mxu0
          %1072 = vdwg.mxu0
          %vm1073 = vcmask 320512
          %1074 = vst.msk [vmem:[#allocation3] sm:$0x3] %vm1073, %v1068
        $region68: #{default_classifier_forward.1} parent=59 // pred_fallthru
          _
        // Predicated region
        $region69: #{default_classifier_forward.1} parent=59 // pred_check
          %p1075 = pneg %p250
        $region70: #{default_classifier_forward.1} parent=59 // pred_check_branch
          %1077 = sbr.rel (%p1075) target = $region72
        $region71: #{default_classifier_forward.1} parent=59 // pred_region
          %s1079 = ssub.s32 32, 32
          %1080 = vsyncadd [#allocation4], %s1079
          %s1082 = sshll.u32 [#allocation3], 4
          %s1083 = int_to_ptr.vmem [resolvable:$true] %s1082
          %1085 = dma.vmem_to_hbm [thread:$0]  %s1083, 32, %s10, [#allocation4]
        $region72: #{default_classifier_forward.1} parent=59 // pred_fallthru
          _
        // Predicated region
        $region73: #{default_classifier_forward.1} parent=59 // pred_check
          %p1086 = pneg %p250
        $region74: #{default_classifier_forward.1} parent=59 // pred_check_branch
          %1088 = sbr.rel (%p1086) target = $region76
        $region75: #{default_classifier_forward.1} parent=59 // pred_region
          %1089 = dma.done [#allocation4], 32
        $region76: #{default_classifier_forward.1} parent=59 // pred_fallthru
          _
      $region60: #{default_classifier_forward.1} parent=5 // pred_fallthru
        _
      %p1090 = scmp.le.s32.totalorder 2, %s17
      // Predicated region
      $region77: #{default_classifier_forward.1} parent=5 // pred_check
        %p1091 = pneg %p1090
      $region78: #{default_classifier_forward.1} parent=5 // pred_check_branch
        %1093 = sbr.rel (%p1091) target = $region80
      $region79: #{default_classifier_forward.1} parent=5 // pred_region
        %s1094 = ssub.s32 %s17, 2
      $region80: #{default_classifier_forward.1} parent=5 // pred_fallthru
        _
    $region6: #{default_classifier_forward.1} parent=1 // loop_footer
      %s21 = sadd.s32 1, %s17
    $region7: #{default_classifier_forward.1} parent=1 // loop_footer_branch
      %16 = sbr.rel target = $region3
    $region8: #{default_classifier_forward.1} parent=1 // loop_exit
      _
    %1095 = vsyncpa [#allocation4], 1
    %s1096 = scalar_lea.sflag [#allocation4], 1
    %1097 = vsyncpa %s1096, 1

</llo_original>
